<compile_context>
chip_gen: v7x
topology: tpu7x:2x2x1
jax: 0.10.0
libtpu: 0.0.40
codegen_flags: <defaults>
</compile_context>

<pallas_src>
import functools
import math

import jax
import jax.numpy as jnp
from jax import lax
from jax.experimental import pallas as pl
from jax.experimental.pallas import tpu as pltpu


_LANE = 128
_DATA_VMEM_BUDGET = 16 << 20     # bytes for the 4 double-buffered in/out tiles
_TARGET_GRID_STEPS = 8           # >=4 steps per TensorCore on v7x + pipelining


def _sublane(itemsize):
    return {4: 8, 2: 16, 1: 32}.get(itemsize, 8)


def _round_up(x, m):
    return ((x + m - 1) // m) * m


def _choose_tiles(R, S, C, itemsize):
    """Pick (row_tile, spatial_tile) for the (R=B*C, S=H*W) layout."""
    sub = _sublane(itemsize)
    g = (C * sub) // math.gcd(C, sub)          # lcm(C, sublane tile)

    # ---- row tile: whole channel groups, full sublane tiles ----
    if R <= g:
        tr = R                                  # full row extent (== array dim)
    else:
        cap = max(g, (256 // g) * g)            # keep the kron'd weight small
        tr = min((R // g) * g, cap)

    # ---- spatial tile from a sublane-padded VMEM budget ----
    tr_pad = _round_up(tr, sub)
    bytes_per_lane = 4 * tr_pad * itemsize      # in + out, double buffered
    ts_budget = max(_LANE, (_DATA_VMEM_BUDGET // bytes_per_lane) // _LANE * _LANE)
    ts = S if S <= ts_budget else ts_budget

    # ---- ensure enough grid steps for megacore + pipelining ----
    def steps(a, b):
        return pl.cdiv(R, a) * pl.cdiv(S, b)

    while steps(tr, ts) < _TARGET_GRID_STEPS and tr > g:
        new_tr = max(g, ((tr // 2 + g - 1) // g) * g)
        if new_tr >= tr:
            break
        tr = new_tr
    while steps(tr, ts) < _TARGET_GRID_STEPS:
        new_ts = max(_LANE, ((ts // 2) // _LANE) * _LANE)
        if new_ts >= ts:
            break
        ts = new_ts
    return tr, ts


def _vmem_need_bytes(tr, ts, itemsize):
    """Sublane/lane-padded VMEM footprint of all pipeline buffers."""
    sub = _sublane(itemsize)
    trp = _round_up(tr, sub)
    tsp = _round_up(ts, _LANE)
    data = 2 * 2 * trp * tsp * itemsize                 # x + out, double-buffered
    wght = 2 * trp * _round_up(tr, _LANE) * itemsize    # (TR, TR) resident weight
    bias = 2 * _round_up(tr, 8) * _LANE * 4             # (TR, 1) f32 resident bias
    return data + wght + bias


def _context_gating_kernel(x_ref, w_ref, b_ref, o_ref, *, row_tile, rows_valid,
                           ragged_rows):
    # x_ref : (TR, TS)  rows = flattened (batch, channel), lanes = spatial
    # w_ref : (TR, TR)  block-diagonal kron(I_K, W), K = TR // C (resident)
    # b_ref : (TR, 1)   per-row bias bias[row % C], f32 (resident)
    # o_ref : (TR, TS)  x * sigmoid(W x + b)
    x = x_ref[...]

    if ragged_rows:
        # Zero the padding rows of the ragged last row-block so uninitialized
        # padding can't leak NaNs into valid rows through the matmul.
        rows = pl.program_id(0) * row_tile + lax.broadcasted_iota(
            jnp.int32, x.shape, 0)
        x = jnp.where(rows < rows_valid, x, jnp.zeros_like(x))

    lin = lax.dot_general(
        w_ref[...], x,
        dimension_numbers=(((1,), (0,)), ((), ())),
        preferred_element_type=jnp.float32) + b_ref[...]

    gate = jax.nn.sigmoid(lin).astype(x.dtype)   # bf16 inputs: gate mult in bf16
    o_ref[...] = (x * gate).astype(o_ref.dtype)


def context_gating_pallas(x_nchw, weight, bias):
    """x_nchw: (B, C, H, W); weight: (C, C) PyTorch Linear weight (out, in);
    bias: (C,).  Returns x * sigmoid(Linear_over_C(x)), shape (B, C, H, W)."""
    B, C, H, W = x_nchw.shape
    S = H * W
    R = B * C
    dtype = x_nchw.dtype
    itemsize = jnp.dtype(dtype).itemsize

    # Free reshape: rows = (batch, channel), lanes = flattened spatial.
    x2 = x_nchw.reshape(R, S)

    tr, ts = _choose_tiles(R, S, C, itemsize)
    k = tr // C
    # Channel mix as a block-diagonal matmul over full-sublane row tiles.
    w_block = jnp.kron(jnp.eye(k, dtype=jnp.float32),
                       weight.astype(jnp.float32)).astype(dtype)
    b_block = jnp.tile(bias.astype(jnp.float32), k).reshape(tr, 1)

    grid = (pl.cdiv(R, tr), pl.cdiv(S, ts))
    need = _vmem_need_bytes(tr, ts, itemsize)
    # TODO(synk): for very large C (resident weight alone > ~24 MiB) switch the
    # contraction to a K-tiled accumulator instead of a resident (C, C) weight.
    vmem_limit = int(min(max(need + (8 << 20), 20 << 20), 48 << 20))

    kernel = functools.partial(
        _context_gating_kernel,
        row_tile=tr, rows_valid=R, ragged_rows=(R % tr) != 0)

    cost = pl.CostEstimate(
        flops=2 * C * R * S + 3 * R * S,
        transcendentals=R * S,
        bytes_accessed=2 * R * S * itemsize + C * C * itemsize)

    out2 = pl.pallas_call(
        kernel,
        out_shape=jax.ShapeDtypeStruct((R, S), dtype),
        grid=grid,
        in_specs=[
            pl.BlockSpec((tr, ts), lambda i, j: (i, j)),
            pl.BlockSpec((tr, tr), lambda i, j: (0, 0)),   # resident weight
            pl.BlockSpec((tr, 1), lambda i, j: (0, 0)),    # resident bias
        ],
        out_specs=pl.BlockSpec((tr, ts), lambda i, j: (i, j)),
        compiler_params=pltpu.CompilerParams(
            dimension_semantics=("parallel", "parallel"),
            vmem_limit_bytes=vmem_limit),
        cost_estimate=cost,
    )(x2, w_block, b_block)

    return out2.reshape(B, C, H, W)


def _reference(x_nchw, weight, bias):
    # Pure-JAX reference matching the PyTorch semantics exactly.
    x_nhwc = jnp.transpose(x_nchw, (0, 2, 3, 1))
    lin = jnp.einsum("bhwc,oc->bhwo", x_nhwc, weight) + bias
    lin = jnp.transpose(lin, (0, 3, 1, 2))
    return x_nchw * jax.nn.sigmoid(lin)


if __name__ == "__main__":
    key = jax.random.PRNGKey(0)
    B, C, H, W = 2, 4, 16, 16

    kx, kw, kb = jax.random.split(key, 3)
    x = jax.random.normal(kx, (B, C, H, W), dtype=jnp.float32)
    # Deterministic synthetic parameters (nn.Linear(input_num, input_num)):
    bound = 1.0 / (C ** 0.5)
    weight = jax.random.uniform(kw, (C, C), jnp.float32, -bound, bound)
    bias = jax.random.uniform(kb, (C,), jnp.float32, -bound, bound)

    out = context_gating_pallas(x, weight, bias)
    jax.block_until_ready(out)

    ref = _reference(x, weight, bias)
    assert out.shape == (B, C, H, W)
    assert jnp.allclose(out, ref, atol=1e-5, rtol=1e-5)

    print("KERNEL_OK")
</pallas_src>

<mosaic_0001>
module attributes {stable_mosaic.version = 11 : i64} {
  func.func @_context_gating_kernel(%arg0: i32, %arg1: i32, %arg2: memref<8x128xf32, #tpu.memory_space<vmem>>, %arg3: memref<8x8xf32, #tpu.memory_space<vmem>>, %arg4: memref<8x1xf32, #tpu.memory_space<vmem>>, %arg5: memref<8x128xf32, #tpu.memory_space<vmem>>) attributes {dimension_semantics = [#tpu.dimension_semantics<parallel>, #tpu.dimension_semantics<parallel>], iteration_bounds = array<i64: 1, 2>, scalar_prefetch = 0 : i64, scratch_operands = 0 : i64, tpu.core_type = #tpu.core_type<tc>, window_params = [{transform_indices = @transform_0, window_bounds = array<i64: 8, 128>}, {pipeline_mode = #tpu.pipeline_mode<synchronous>, transform_indices = @transform_1, window_bounds = array<i64: 8, 8>}, {pipeline_mode = #tpu.pipeline_mode<synchronous>, transform_indices = @transform_2, window_bounds = array<i64: 8, 1>}, {transform_indices = @transform_3, window_bounds = array<i64: 8, 128>}]} {
    %c0 = arith.constant 0 : index
    %c0_0 = arith.constant 0 : index
    %0 = vector.load %arg2[%c0, %c0_0] : memref<8x128xf32, #tpu.memory_space<vmem>>, vector<8x128xf32>
    %c0_1 = arith.constant 0 : index
    %c0_2 = arith.constant 0 : index
    %1 = vector.load %arg3[%c0_1, %c0_2] : memref<8x8xf32, #tpu.memory_space<vmem>>, vector<8x8xf32>
    %cst = arith.constant dense<0.000000e+00> : vector<8x128xf32>
    %2 = tpu.matmul %1, %0, %cst {dimension_numbers = #tpu.dot_dimension_numbers<[1], [0], [0], [1], [0, 0, 1, 1], [], []>} : vector<8x8xf32>, vector<8x128xf32>, vector<8x128xf32> -> vector<8x128xf32>
    %c0_3 = arith.constant 0 : index
    %c0_4 = arith.constant 0 : index
    %3 = vector.load %arg4[%c0_3, %c0_4] : memref<8x1xf32, #tpu.memory_space<vmem>>, vector<8x1xf32>
    %4 = vector.broadcast %3 : vector<8x1xf32> to vector<8x128xf32>
    %5 = arith.addf %2, %4 : vector<8x128xf32>
    %6 = arith.negf %5 : vector<8x128xf32>
    %7 = math.exp %6 : vector<8x128xf32>
    %cst_5 = arith.constant 1.000000e+00 : f32
    %8 = vector.broadcast %cst_5 : f32 to vector<8x128xf32>
    %9 = arith.addf %8, %7 : vector<8x128xf32>
    %10 = arith.divf %8, %9 : vector<8x128xf32>
    %11 = arith.mulf %0, %10 : vector<8x128xf32>
    %c0_6 = arith.constant 0 : index
    %c0_7 = arith.constant 0 : index
    %12 = vector.load %arg5[%c0_6, %c0_7] : memref<8x128xf32, #tpu.memory_space<vmem>>, vector<8x128xf32>
    tpu.vector_store %arg5[%c0_6, %c0_7], %11 {strides = array<i32>} : memref<8x128xf32, #tpu.memory_space<vmem>>, vector<8x128xf32>,
    return
  }
  func.func @transform_0(%arg0: i32, %arg1: i32) -> (i32, i32) {
    %c0_i32 = arith.constant 0 : i32
    return %arg0, %arg1 : i32, i32
  }
  func.func @transform_1(%arg0: i32, %arg1: i32) -> (i32, i32) {
    %c0_i32 = arith.constant 0 : i32
    %c0_i32_0 = arith.constant 0 : i32
    %c0_i32_1 = arith.constant 0 : i32
    return %c0_i32, %c0_i32_0 : i32, i32
  }
  func.func @transform_2(%arg0: i32, %arg1: i32) -> (i32, i32) {
    %c0_i32 = arith.constant 0 : i32
    %c0_i32_0 = arith.constant 0 : i32
    %c0_i32_1 = arith.constant 0 : i32
    return %c0_i32, %c0_i32_0 : i32, i32
  }
  func.func @transform_3(%arg0: i32, %arg1: i32) -> (i32, i32) {
    %c0_i32 = arith.constant 0 : i32
    return %arg0, %arg1 : i32, i32
  }
}

</mosaic_0001>

<llo_original>
// kernel: tpu_custom_call.1
$region0: #{tpu_custom_call.1}
  #allocation0 [shape = 'u32[]', space=smem, size = 0x4, offset = 0x4, fixed_abs, tag = 'smem constant byte address 0x4 - core index']
  #allocation1 [shape = 'u32[144,128]{1,0:T(1,128)}', space=vmem, size = 0x12000, scoped, tag = 'internal scratch']
  %s0 = inlined_call_operand.hbm [shape: f32[8,256], index: 0, kind: input, shape index: {}]
  %s1 = inlined_call_operand.vmem [shape: f32[8,8], index: 1, kind: input, shape index: {}]
  %s2 = inlined_call_operand.vmem [shape: f32[8,1], index: 2, kind: input, shape index: {}]
  %s3 = inlined_call_operand.hbm [shape: f32[8,256], index: 3, kind: output, shape index: {}]
  %s4 = sld [smem:[#allocation0]]
  $region49: #{tpu_custom_call.1} parent=0
    _
  %s6 = ssub.s32 1, %s4
  %s7 = scalar_select 0, %s6, %s4
  $region1: #{tpu_custom_call.1} parent=0
    #allocation2 [shape = 'u8[8192]{0}', space=vmem, size = 0x2000, scoped, tag = 'input window, operand 0']
    #allocation3 [shape = 's32[2]{0}', space=sflag, size = 0x8, scoped, tag = 'scoped memory for tpu_custom_call.1']
    #allocation4 [shape = 's32[2]{0}', space=sflag, size = 0x8, scoped, tag = 'scoped memory for tpu_custom_call.1']
    #allocation5 [shape = 'u8[8192]{0}', space=vmem, size = 0x2000, scoped, tag = 'output window, operand 0']
    %8 = vsyncpa [#allocation3], 0
    %s9 = scalar_lea.sflag [#allocation3], 1
    %10 = vsyncpa %s9, 0
    %11 = vsyncpa [#allocation4], 0
    %s12 = scalar_lea.sflag [#allocation4], 1
    %13 = vsyncpa %s12, 0
    loop: start=0, step=1, limit=4
    $region2: #{tpu_custom_call.1} parent=1 // loop_pre_header
      _
    $region3: #{tpu_custom_call.1} parent=1 // loop_header
      %s15 = sphi 0, %s19
      %p16 = scmp.ge.s32.totalorder %s15, 4
      %s22 = sphi 0, %s34
      %s23 = sphi 0, %s30
      %s24 = sphi 0, %s22
      %s25 = sphi 0, %s23
      %s26 = sphi 0, %s24
      %s27 = sphi 0, %s25
      %s39 = sphi 0, %s41
      %s42 = sphi 0, %s39
      %s43 = sphi 0, %s42
      %s59 = sphi 0, %s43
      %s63 = sphi 0, %s63
      %s65 = sphi 0, %s63
      %s66 = sphi 0, %s65
      %s80 = sphi 0, %s66
      %s84 = sphi 0, %s84
      %s86 = sphi 0, %s84
      %s87 = sphi 0, %s86
      %s101 = sphi 0, %s87
      %s109 = sphi 0, %s111
      %s112 = sphi 0, %s109
      %s113 = sphi 0, %s112
      %s129 = sphi 0, %s113
    $region4: #{tpu_custom_call.1} parent=1 // loop_header_branch
      %18 = sbr.rel (%p16) target = $region8
    $region5: #{tpu_custom_call.1} parent=1 // loop_body
      %s20 = ssub.s32 %s15, 1
      %s21 = ssub.s32 %s15, 2
      %s28 = sadd.s32 1, %s23
      %p29 = scmp.ge.s32.totalorder %s28, 2
      %s30 = scalar_select %p29, 0, %s28
      %s31 = sadd.s32 1, %s22
      %s32 = scalar_select %p29, %s31, %s22
      %p33 = scmp.ge.s32.totalorder %s32, 1
      %s34 = scalar_select %p33, 0, %s32
      %s35 = ssub.s32 %s22, %s34
      %s36 = ssub.s32 %s23, %s30
      %s37 = sor.u32 %s35, %s36
      %p38 = scmp.eq.s32.totalorder %s37, 0
      %s40 = sadd.s32 %s39, 1
      %s41 = scalar_select %p38, %s39, %s40
      %p44 = pneg %p38
      %p45 = scmp.eq.s32.totalorder %s15, 1
      %p46 = por %p44, %p45
      %p47 = scmp.ne.s32.totalorder %s39, %s42
      %p48 = scmp.eq.s32.totalorder %s15, 0
      %p49 = por %p47, %p48
      %p50 = scmp.ne.s32.totalorder %s39, %s42
      %p51 = scmp.eq.s32.totalorder %s20, 1
      %p52 = por %p50, %p51
      %p53 = scmp.ne.s32.totalorder %s42, %s43
      %p54 = scmp.eq.s32.totalorder %s20, 0
      %p55 = por %p53, %p54
      %p56 = scmp.ne.s32.totalorder %s42, %s43
      %p57 = scmp.eq.s32.totalorder %s21, 1
      %p58 = por %p56, %p57
      %p60 = scmp.ne.s32.totalorder %s43, %s59
      %p61 = scmp.eq.s32.totalorder %s21, 0
      %p62 = por %p60, %p61
      %s64 = sadd.s32 %s63, 1
      %p67 = scmp.eq.s32.totalorder %s15, 1
      %p68 = scmp.ne.s32.totalorder %s63, %s65
      %p69 = scmp.eq.s32.totalorder %s15, 0
      %p70 = por %p68, %p69
      %p71 = scmp.ne.s32.totalorder %s63, %s65
      %p72 = scmp.eq.s32.totalorder %s20, 1
      %p73 = por %p71, %p72
      %p74 = scmp.ne.s32.totalorder %s65, %s66
      %p75 = scmp.eq.s32.totalorder %s20, 0
      %p76 = por %p74, %p75
      %p77 = scmp.ne.s32.totalorder %s65, %s66
      %p78 = scmp.eq.s32.totalorder %s21, 1
      %p79 = por %p77, %p78
      %p81 = scmp.ne.s32.totalorder %s66, %s80
      %p82 = scmp.eq.s32.totalorder %s21, 0
      %p83 = por %p81, %p82
      %s85 = sadd.s32 %s84, 1
      %p88 = scmp.eq.s32.totalorder %s15, 1
      %p89 = scmp.ne.s32.totalorder %s84, %s86
      %p90 = scmp.eq.s32.totalorder %s15, 0
      %p91 = por %p89, %p90
      %p92 = scmp.ne.s32.totalorder %s84, %s86
      %p93 = scmp.eq.s32.totalorder %s20, 1
      %p94 = por %p92, %p93
      %p95 = scmp.ne.s32.totalorder %s86, %s87
      %p96 = scmp.eq.s32.totalorder %s20, 0
      %p97 = por %p95, %p96
      %p98 = scmp.ne.s32.totalorder %s86, %s87
      %p99 = scmp.eq.s32.totalorder %s21, 1
      %p100 = por %p98, %p99
      %p102 = scmp.ne.s32.totalorder %s87, %s101
      %p103 = scmp.eq.s32.totalorder %s21, 0
      %p104 = por %p102, %p103
      %s105 = ssub.s32 %s22, %s34
      %s106 = ssub.s32 %s23, %s30
      %s107 = sor.u32 %s105, %s106
      %p108 = scmp.eq.s32.totalorder %s107, 0
      %s110 = sadd.s32 %s109, 1
      %s111 = scalar_select %p108, %s109, %s110
      %p114 = pneg %p108
      %p115 = scmp.eq.s32.totalorder %s15, 1
      %p116 = por %p114, %p115
      %p117 = scmp.ne.s32.totalorder %s109, %s112
      %p118 = scmp.eq.s32.totalorder %s15, 0
      %p119 = por %p117, %p118
      %p120 = scmp.ne.s32.totalorder %s109, %s112
      %p121 = scmp.eq.s32.totalorder %s20, 1
      %p122 = por %p120, %p121
      %p123 = scmp.ne.s32.totalorder %s112, %s113
      %p124 = scmp.eq.s32.totalorder %s20, 0
      %p125 = por %p123, %p124
      %p126 = scmp.ne.s32.totalorder %s112, %s113
      %p127 = scmp.eq.s32.totalorder %s21, 1
      %p128 = por %p126, %p127
      %p130 = scmp.ne.s32.totalorder %s113, %s129
      %p131 = scmp.eq.s32.totalorder %s21, 0
      %p132 = por %p130, %p131
      %p133 = scmp.le.s32.totalorder 1, %s15
      %p134 = scmp.lt.s32.totalorder %s15, 3
      %p135 = pnand %p133, %p134
      %p136 = pneg %p135
      // Predicated region
      $region9: #{tpu_custom_call.1} parent=5 // pred_check
        _
      $region10: #{tpu_custom_call.1} parent=5 // pred_check_branch
        %138 = sbr.rel (%p135) target = $region12
      $region11: #{tpu_custom_call.1} parent=5 // pred_region
        %s139 = ssub.s32 %s15, 1
        // Predicated region
        $region13: #{tpu_custom_call.1} parent=11 // pred_check
          %p140 = pneg %p76
        $region14: #{tpu_custom_call.1} parent=11 // pred_check_branch
          %142 = sbr.rel (%p140) target = $region16
        $region15: #{tpu_custom_call.1} parent=11 // pred_region
          _
        $region16: #{tpu_custom_call.1} parent=11 // pred_fallthru
          _
        // Predicated region
        $region17: #{tpu_custom_call.1} parent=11 // pred_check
          %p143 = pneg %p97
        $region18: #{tpu_custom_call.1} parent=11 // pred_check_branch
          %145 = sbr.rel (%p143) target = $region20
        $region19: #{tpu_custom_call.1} parent=11 // pred_region
          _
        $region20: #{tpu_custom_call.1} parent=11 // pred_fallthru
          _
      $region12: #{tpu_custom_call.1} parent=5 // pred_fallthru
        _
      %p146 = scmp.lt.s32.totalorder %s15, 2
      // Predicated region
      $region21: #{tpu_custom_call.1} parent=5 // pred_check
        %p147 = pneg %p146
      $region22: #{tpu_custom_call.1} parent=5 // pred_check_branch
        %149 = sbr.rel (%p147) target = $region24
      $region23: #{tpu_custom_call.1} parent=5 // pred_region
        // Predicated region
        $region25: #{tpu_custom_call.1} parent=23 // pred_check
          %p150 = pneg %p49
        $region26: #{tpu_custom_call.1} parent=23 // pred_check_branch
          %152 = sbr.rel (%p150) target = $region28
        $region27: #{tpu_custom_call.1} parent=23 // pred_region
          %s153 = sand.u32 %s39, 1
          %s154 = scalar_lea.sflag [#allocation3], %s153
          %s155 = sand.u32 %s39, 1
          %s156 = smul.addr %s155, 8
          %s157 = scalar_lea.vmem [#allocation2], %s156
          %s159 = ssub.s32 128, 128
          %160 = vsyncadd %s154, %s159
          %s161 = smul.addr %s22, 2
          %s162 = sadd.s32 %s23, %s161
          %s163 = smul.addr %s162, 128
          %s164 = scalar_lea.hbm %s0, %s163
          %s166 = sshll.u32 %s157, 4
          %s167 = int_to_ptr.vmem [resolvable:$true] %s166
          %169 = dma.hbm_to_vmem [thread:$0]  %s164, 128, %s167, %s154
        $region28: #{tpu_custom_call.1} parent=23 // pred_fallthru
          _
      $region24: #{tpu_custom_call.1} parent=5 // pred_fallthru
        _
      %p170 = scmp.le.s32.totalorder 1, %s15
      %p171 = scmp.lt.s32.totalorder %s15, 3
      %p172 = pnand %p170, %p171
      %p173 = pneg %p172
      // Predicated region
      $region29: #{tpu_custom_call.1} parent=5 // pred_check
        _
      $region30: #{tpu_custom_call.1} parent=5 // pred_check_branch
        %175 = sbr.rel (%p172) target = $region32
      $region31: #{tpu_custom_call.1} parent=5 // pred_region
        %s176 = ssub.s32 %s15, 1
        %s177 = sand.u32 %s42, 1
        %s178 = scalar_lea.sflag [#allocation3], %s177
        %s179 = sand.u32 %s42, 1
        %s180 = smul.addr %s179, 8
        %s181 = scalar_lea.vmem [#allocation2], %s180
        // Predicated region
        $region33: #{tpu_custom_call.1} parent=31 // pred_check
          %p182 = pneg %p55
        $region34: #{tpu_custom_call.1} parent=31 // pred_check_branch
          %184 = sbr.rel (%p182) target = $region36
        $region35: #{tpu_custom_call.1} parent=31 // pred_region
          %185 = dma.done %s178, 128
        $region36: #{tpu_custom_call.1} parent=31 // pred_fallthru
          _
        %s186 = sand.u32 %s42, 1
        %s187 = scalar_lea.sflag [#allocation3], %s186
        %s188 = sand.u32 %s42, 1
        %s189 = smul.addr %s188, 8
        %s190 = scalar_lea.vmem [#allocation2], %s189
        %p191 = pneg %p55
        %p192 = pneg %p52
        %p193 = pneg %p76
        %p194 = pneg %p73
        %p195 = pneg %p97
        %p196 = pneg %p94
        %p197 = pneg %p125
        %p198 = pneg %p122
        %s199 = sand.u32 %s112, 1
        %s200 = scalar_lea.sflag [#allocation4], %s199
        %s201 = sand.u32 %s112, 1
        %s202 = smul.addr %s201, 8
        %s203 = scalar_lea.vmem [#allocation5], %s202
        %v204 = vld [vmem:[%s181] sm:$0xff]
        %v205 = vld [vmem:[%s1] sm:$0xff]
        %v206 = vld [vmem:[%s2] sm:$0xff]
        %208 = vset.pattern.permute.xlu0 0
        %209 = vperm.xlu0 %208, %v206
        %v210 = vpop.permute.xlu0 %209
        %vm212 = vcmask 64512
        %v214 = vsel %vm212, %v205, 0
        %216 = vmatprep.subr.mxu0 0.0
        %217 = vmatpush1.msra.mxu0 %v204
        %218 = vmatprep.subr.mxu0 0.0
        %219 = vmatpush1.msra.mxu0 0.0
        %220 = vmatprep.subr.mxu0 0.0
        %221 = vmatpush1.msra.mxu0 0.0
        %222 = vmatprep.subr.mxu0 0.0
        %223 = vmatpush1.msra.mxu0 0.0
        %224 = vmatprep.subr.mxu0 0.0
        %225 = vmatpush1.msra.mxu0 0.0
        %226 = vmatprep.subr.mxu0 0.0
        %227 = vmatpush1.msra.mxu0 0.0
        %228 = vmatprep.subr.mxu0 0.0
        %229 = vmatpush1.msra.mxu0 0.0
        %230 = vmatprep.subr.mxu0 0.0
        %231 = vmatpush1.msra.mxu0 0.0
        %232 = vmatprep.subr.mxu0 0.0
        %233 = vmatpush1.msra.mxu0 0.0
        %234 = vmatprep.subr.mxu0 0.0
        %235 = vmatpush1.msra.mxu0 0.0
        %236 = vmatprep.subr.mxu0 0.0
        %237 = vmatpush1.msra.mxu0 0.0
        %238 = vmatprep.subr.mxu0 0.0
        %239 = vmatpush1.msra.mxu0 0.0
        %240 = vmatprep.subr.mxu0 0.0
        %241 = vmatpush1.msra.mxu0 0.0
        %242 = vmatprep.subr.mxu0 0.0
        %243 = vmatpush1.msra.mxu0 0.0
        %244 = vmatprep.subr.mxu0 0.0
        %245 = vmatpush1.msra.mxu0 0.0
        %246 = vmatprep.subr.mxu0 0.0
        %247 = vmatpush1.msra.mxu0 0.0
        %248 = vmatprep.subr.mxu0 0.0
        %249 = vmatpush1.msra.mxu0 0.0
        %250 = vmatprep.subr.mxu0 0.0
        %251 = vmatpush1.msra.mxu0 0.0
        %252 = vmatprep.subr.mxu0 0.0
        %253 = vmatpush1.msra.mxu0 0.0
        %254 = vmatprep.subr.mxu0 0.0
        %255 = vmatpush1.msra.mxu0 0.0
        %256 = vmatprep.subr.mxu0 0.0
        %257 = vmatpush1.msra.mxu0 0.0
        %258 = vmatprep.subr.mxu0 0.0
        %259 = vmatpush1.msra.mxu0 0.0
        %260 = vmatprep.subr.mxu0 0.0
        %261 = vmatpush1.msra.mxu0 0.0
        %262 = vmatprep.subr.mxu0 0.0
        %263 = vmatpush1.msra.mxu0 0.0
        %264 = vmatprep.subr.mxu0 0.0
        %265 = vmatpush1.msra.mxu0 0.0
        %266 = vmatprep.subr.mxu0 0.0
        %267 = vmatpush1.msra.mxu0 0.0
        %268 = vmatprep.subr.mxu0 0.0
        %269 = vmatpush1.msra.mxu0 0.0
        %270 = vmatprep.subr.mxu0 0.0
        %271 = vmatpush1.msra.mxu0 0.0
        %272 = vmatprep.subr.mxu0 0.0
        %273 = vmatpush1.msra.mxu0 0.0
        %274 = vmatprep.subr.mxu0 0.0
        %275 = vmatpush1.msra.mxu0 0.0
        %276 = vmatprep.subr.mxu0 0.0
        %277 = vmatpush1.msra.mxu0 0.0
        %278 = vmatprep.subr.mxu0 0.0
        %279 = vmatpush1.msra.mxu0 0.0
        %280 = vmatprep.mubr.f32.mxu0 0.0
        %281 = vmatmul.mubr.f32.gmra.mrb[0].mxu0 %v214
        %v282 = vpop.f32.mrb[0].mxu0
        %v283 = vadd.f32 %v210, %v282
        %v284 = vpop.f32.mrb[0].mxu0
        %285 = vdwg.mxu0
        %v286 = vxor.u32 %v283, 2147483648
        %v287 = vmul.f32 %v286, 1.442695
        %v288 = vpow.pop %v287
        %v289 = vadd.f32 %v288, 1.0
        %v290 = vrcp.pop %v289
        %v291 = vmul.f32 1.0, %v290
        %v292 = vmul.f32 %v204, %v291
        %293 = vst [vmem:[%s203] sm:$0xff] %v292
        %s294 = sand.u32 %s112, 1
        %s295 = scalar_lea.sflag [#allocation4], %s294
        %s296 = sand.u32 %s112, 1
        %s297 = smul.addr %s296, 8
        %s298 = scalar_lea.vmem [#allocation5], %s297
        // Predicated region
        $region37: #{tpu_custom_call.1} parent=31 // pred_check
          %p299 = pneg %p122
        $region38: #{tpu_custom_call.1} parent=31 // pred_check_branch
          %301 = sbr.rel (%p299) target = $region40
        $region39: #{tpu_custom_call.1} parent=31 // pred_region
          %s303 = ssub.s32 128, 128
          %304 = vsyncadd %s295, %s303
          %s305 = smul.addr %s24, 2
          %s306 = sadd.s32 %s25, %s305
          %s307 = smul.addr %s306, 128
          %s308 = scalar_lea.hbm %s3, %s307
          %s310 = sshll.u32 %s298, 4
          %s311 = int_to_ptr.vmem [resolvable:$true] %s310
          %313 = dma.vmem_to_hbm [thread:$0]  %s311, 128, %s308, %s295
        $region40: #{tpu_custom_call.1} parent=31 // pred_fallthru
          _
      $region32: #{tpu_custom_call.1} parent=5 // pred_fallthru
        _
      %p314 = scmp.le.s32.totalorder 2, %s15
      // Predicated region
      $region41: #{tpu_custom_call.1} parent=5 // pred_check
        %p315 = pneg %p314
      $region42: #{tpu_custom_call.1} parent=5 // pred_check_branch
        %317 = sbr.rel (%p315) target = $region44
      $region43: #{tpu_custom_call.1} parent=5 // pred_region
        %s318 = ssub.s32 %s15, 2
        // Predicated region
        $region45: #{tpu_custom_call.1} parent=43 // pred_check
          %p319 = pneg %p128
        $region46: #{tpu_custom_call.1} parent=43 // pred_check_branch
          %321 = sbr.rel (%p319) target = $region48
        $region47: #{tpu_custom_call.1} parent=43 // pred_region
          %s322 = sand.u32 %s113, 1
          %s323 = scalar_lea.sflag [#allocation4], %s322
          %s324 = sand.u32 %s113, 1
          %s325 = smul.addr %s324, 8
          %s326 = scalar_lea.vmem [#allocation5], %s325
          %327 = dma.done %s323, 128
        $region48: #{tpu_custom_call.1} parent=43 // pred_fallthru
          _
      $region44: #{tpu_custom_call.1} parent=5 // pred_fallthru
        _
    $region6: #{tpu_custom_call.1} parent=1 // loop_footer
      %s19 = sadd.s32 1, %s15
    $region7: #{tpu_custom_call.1} parent=1 // loop_footer_branch
      %14 = sbr.rel target = $region3
    $region8: #{tpu_custom_call.1} parent=1 // loop_exit
      _
    %328 = vsyncpa [#allocation3], 1
    %s329 = scalar_lea.sflag [#allocation3], 1
    %330 = vsyncpa %s329, 1
    %331 = vsyncpa [#allocation4], 1
    %s332 = scalar_lea.sflag [#allocation4], 1
    %333 = vsyncpa %s332, 1

</llo_original>
